<compile_context>
chip_gen: v6e
topology: v6e:2x2x1
jax: 0.10.0
libtpu: 0.0.40
codegen_flags: <defaults>
</compile_context>

<pallas_src>
import jax
import jax.numpy as jnp
from jax import lax
from jax.experimental import pallas as pl
from jax.experimental.pallas import tpu as pltpu


def rnn_classifier_kernel(tok_ref, proj_ref, whh_ref, wout_ref, bout_ref, o_ref):
    """One batch-tile per grid step; every operand is VMEM-resident.

    tok_ref  : (Bt, T) int32   token ids (batch-major, as produced upstream)
    proj_ref : (V, H)  f32     precomputed E @ W_ih^T   (embedding fused with input proj)
    whh_ref  : (H, H)  f32     W_hh^T  (pre-transposed -> natural (K,N) contraction)
    wout_ref : (H, C)  f32     W_out^T (pre-transposed)
    bout_ref : (1, C)  f32     nn.Linear.bias
    o_ref    : (Bt, C) f32     logits
    """
    tok = tok_ref[...]                              # (Bt, T)
    Bt, T = tok.shape
    V, H = proj_ref.shape
    f32 = jnp.float32

    # Time-major one-hot gather of the precomputed projection table with a single MXU
    # matmul: row t*Bt + b of xw == W_ih @ E[tok[b, t]].  tok.T is a single tiny
    # in-kernel XLU transpose of a (Bt, T) int32 tile (replaces the old wrapper HLO).
    # Note: out-of-range ids (>= V) yield an all-zero row (zero embedding), not garbage.
    tok_tm = tok.T                                  # (T, Bt)
    onehot = (tok_tm[:, :, None] ==
              lax.broadcasted_iota(jnp.int32, (T, Bt, V), 2)).astype(f32)   # (T, Bt, V)
    xw = jnp.dot(onehot.reshape(T * Bt, V), proj_ref[...],
                 preferred_element_type=f32)        # (T*Bt, H)

    whh = whh_ref[...]                              # (H, H), already transposed
    h = jnp.zeros((Bt, H), f32)
    # Serial tanh recurrence (T is small & static -> unrolled).  The input projection
    # is fully hoisted, so only h @ W_hh^T + tanh sits on the dependency chain, and
    # each x_t slice is a contiguous, sublane-aligned (Bt, H) tile.
    for t in range(T):
        x_t = xw[t * Bt:(t + 1) * Bt, :]
        h = jnp.tanh(x_t + jnp.dot(h, whh, preferred_element_type=f32))

    # Classification head on the final hidden state: logits = h @ W_out^T + b.
    o_ref[...] = (jnp.dot(h, wout_ref[...], preferred_element_type=f32)
                  + bout_ref[...]).astype(o_ref.dtype)


def prepare_params(emb_table, w_ih, w_hh, w_out, b_out):
    """One-time (model-load) prep:
       * fuse embedding with the RNN input projection: proj = E @ W_ih^T  (V, H)
       * pre-transpose W_hh / W_out so in-kernel matmuls use natural (K, N) layout
       * 2-D bias, f32 everywhere.
    All of this is call-invariant, so the per-call forward path does zero layout work."""
    f32 = jnp.float32
    emb = emb_table.astype(f32)
    proj = jnp.dot(emb, w_ih.astype(f32).T)          # (V, H)
    return (proj,
            w_hh.astype(f32).T,                      # (H, H)
            w_out.astype(f32).T,                     # (H, C)
            b_out.reshape(1, -1).astype(f32))        # (1, C)


@jax.jit
def torch_model_forward(tokens, proj, whh_t, wout_t, b_out2d):
    """TorchModel.forward(x) with y=None -> y_pred logits, fully fused in one pallas_call.

    tokens : (B, T) int32 token ids (batch-major, exactly as the PyTorch module takes them).
    """
    B, T = tokens.shape
    V, H = proj.shape
    C = wout_t.shape[1]

    # One batch tile of 8 rows per grid step when B is a multiple of 8 (amortizes launch
    # overhead over tiles; "parallel" lets v7x's two TensorCores split them).  For a
    # single small batch this degenerates to a 1-step grid with no extra overhead.
    bt = 8 if (B >= 8 and B % 8 == 0) else B
    grid = (B // bt,)

    return pl.pallas_call(
        rnn_classifier_kernel,
        out_shape=jax.ShapeDtypeStruct((B, C), jnp.float32),
        grid=grid,
        in_specs=[
            pl.BlockSpec((bt, T), lambda i: (i, 0)),      # tokens: per-tile
            pl.BlockSpec((V, H), lambda i: (0, 0)),       # proj:   resident across tiles
            pl.BlockSpec((H, H), lambda i: (0, 0)),       # W_hh^T: resident
            pl.BlockSpec((H, C), lambda i: (0, 0)),       # W_out^T: resident
            pl.BlockSpec((1, C), lambda i: (0, 0)),       # bias:   resident
        ],
        out_specs=pl.BlockSpec((bt, C), lambda i: (i, 0)),
        compiler_params=pltpu.CompilerParams(dimension_semantics=("parallel",)),
    )(tokens, proj, whh_t, wout_t, b_out2d)


def reference_forward(tokens, emb_table, w_ih, w_hh, w_out, b_out):
    """Plain-JAX replica of TorchModel.forward (y=None).  nn.RNN is constructed with
    bias=False in the spec, so there are no recurrence biases."""
    x = emb_table[tokens].astype(jnp.float32)        # (B, T, D)
    B, T, _ = x.shape
    H = w_hh.shape[0]
    h = jnp.zeros((B, H), jnp.float32)
    for t in range(T):
        h = jnp.tanh(x[:, t, :] @ w_ih.T + h @ w_hh.T)
    return h @ w_out.T + b_out


if __name__ == "__main__":
    # Shapes implied by the module: sentence_length=6 (6-class a-position task),
    # hidden_dim=10 (hard-coded), small vocab / embedding dim.
    VOCAB = 28
    VECTOR_DIM = 16
    SENT_LEN = 6
    HIDDEN = 10
    NUM_CLASSES = 6
    BATCH = 8

    key = jax.random.PRNGKey(0)
    k_tok, k_emb, k_ih, k_hh, k_w, k_b = jax.random.split(key, 6)

    tokens = jax.random.randint(k_tok, (BATCH, SENT_LEN), 0, VOCAB, dtype=jnp.int32)
    emb_table = jax.random.normal(k_emb, (VOCAB, VECTOR_DIM), jnp.float32) * 0.1
    w_ih = jax.random.normal(k_ih, (HIDDEN, VECTOR_DIM), jnp.float32) * 0.1
    w_hh = jax.random.normal(k_hh, (HIDDEN, HIDDEN), jnp.float32) * 0.1
    w_out = jax.random.normal(k_w, (NUM_CLASSES, HIDDEN), jnp.float32) * 0.1
    b_out = jax.random.normal(k_b, (NUM_CLASSES,), jnp.float32) * 0.1

    params = prepare_params(emb_table, w_ih, w_hh, w_out, b_out)
    y_pred = torch_model_forward(tokens, *params)
    y_pred = jax.block_until_ready(y_pred)

    y_ref = reference_forward(tokens, emb_table, w_ih, w_hh, w_out, b_out)
    assert y_pred.shape == (BATCH, NUM_CLASSES)
    assert jnp.allclose(y_pred, y_ref, atol=1e-5, rtol=1e-5), (
        float(jnp.max(jnp.abs(y_pred - y_ref))))

    # TODO(synk): CrossEntropyLoss training path (y is not None) is not part of the
    # inference kernel; only the y_pred logits path is implemented.
    print("KERNEL_OK")
</pallas_src>

<mosaic_0001>
module attributes {stable_mosaic.version = 11 : i64} {
  func.func @rnn_classifier_kernel(%arg0: i32, %arg1: memref<8x6xi32, #tpu.memory_space<vmem>>, %arg2: memref<28x10xf32, #tpu.memory_space<vmem>>, %arg3: memref<10x10xf32, #tpu.memory_space<vmem>>, %arg4: memref<10x6xf32, #tpu.memory_space<vmem>>, %arg5: memref<1x6xf32, #tpu.memory_space<vmem>>, %arg6: memref<8x6xf32, #tpu.memory_space<vmem>>) attributes {dimension_semantics = [#tpu.dimension_semantics<parallel>], iteration_bounds = array<i64: 1>, scalar_prefetch = 0 : i64, scratch_operands = 0 : i64, tpu.core_type = #tpu.core_type<tc>, window_params = [{transform_indices = @transform_0, window_bounds = array<i64: 8, 6>}, {pipeline_mode = #tpu.pipeline_mode<synchronous>, transform_indices = @transform_1, window_bounds = array<i64: 28, 10>}, {pipeline_mode = #tpu.pipeline_mode<synchronous>, transform_indices = @transform_2, window_bounds = array<i64: 10, 10>}, {pipeline_mode = #tpu.pipeline_mode<synchronous>, transform_indices = @transform_3, window_bounds = array<i64: 10, 6>}, {pipeline_mode = #tpu.pipeline_mode<synchronous>, transform_indices = @transform_4, window_bounds = array<i64: 1, 6>}, {transform_indices = @transform_5, window_bounds = array<i64: 8, 6>}]} {
    %c0 = arith.constant 0 : index
    %c0_0 = arith.constant 0 : index
    %0 = vector.load %arg1[%c0, %c0_0] : memref<8x6xi32, #tpu.memory_space<vmem>>, vector<8x6xi32>
    %1 = tpu.transpose %0, [1, 0] : vector<8x6xi32> -> vector<6x8xi32>
    %2 = vector.shape_cast %1 : vector<6x8xi32> to vector<6x8x1xi32>
    %3 = tpu.iota {dimensions = array<i32: 2>} : vector<6x8x28xi32>
    %4 = vector.broadcast %2 : vector<6x8x1xi32> to vector<6x8x28xi32>
    %5 = arith.cmpi eq, %4, %3 : vector<6x8x28xi32>
    %6 = arith.extui %5 : vector<6x8x28xi1> to vector<6x8x28xi32>
    %7 = arith.sitofp %6 : vector<6x8x28xi32> to vector<6x8x28xf32>
    %8 = vector.shape_cast %7 : vector<6x8x28xf32> to vector<48x28xf32>
    %c0_1 = arith.constant 0 : index
    %c0_2 = arith.constant 0 : index
    %9 = vector.load %arg2[%c0_1, %c0_2] : memref<28x10xf32, #tpu.memory_space<vmem>>, vector<28x10xf32>
    %cst = arith.constant dense<0.000000e+00> : vector<48x10xf32>
    %10 = tpu.matmul %8, %9, %cst {dimension_numbers = #tpu.dot_dimension_numbers<[1], [0], [0], [1], [0, 0, 1, 1], [], []>} : vector<48x28xf32>, vector<28x10xf32>, vector<48x10xf32> -> vector<48x10xf32>
    %c0_3 = arith.constant 0 : index
    %c0_4 = arith.constant 0 : index
    %11 = vector.load %arg3[%c0_3, %c0_4] : memref<10x10xf32, #tpu.memory_space<vmem>>, vector<10x10xf32>
    %cst_5 = arith.constant 0.000000e+00 : f32
    %12 = vector.broadcast %cst_5 : f32 to vector<8x10xf32>
    %13 = vector.extract_strided_slice %10 {offsets = [0, 0], sizes = [8, 10], strides = [1, 1]} : vector<48x10xf32> to vector<8x10xf32>
    %cst_6 = arith.constant dense<0.000000e+00> : vector<8x10xf32>
    %14 = tpu.matmul %12, %11, %cst_6 {dimension_numbers = #tpu.dot_dimension_numbers<[1], [0], [0], [1], [0, 0, 1, 1], [], []>} : vector<8x10xf32>, vector<10x10xf32>, vector<8x10xf32> -> vector<8x10xf32>
    %15 = arith.addf %13, %14 : vector<8x10xf32>
    %16 = math.tanh %15 : vector<8x10xf32>
    %17 = vector.extract_strided_slice %10 {offsets = [8, 0], sizes = [8, 10], strides = [1, 1]} : vector<48x10xf32> to vector<8x10xf32>
    %cst_7 = arith.constant dense<0.000000e+00> : vector<8x10xf32>
    %18 = tpu.matmul %16, %11, %cst_7 {dimension_numbers = #tpu.dot_dimension_numbers<[1], [0], [0], [1], [0, 0, 1, 1], [], []>} : vector<8x10xf32>, vector<10x10xf32>, vector<8x10xf32> -> vector<8x10xf32>
    %19 = arith.addf %17, %18 : vector<8x10xf32>
    %20 = math.tanh %19 : vector<8x10xf32>
    %21 = vector.extract_strided_slice %10 {offsets = [16, 0], sizes = [8, 10], strides = [1, 1]} : vector<48x10xf32> to vector<8x10xf32>
    %cst_8 = arith.constant dense<0.000000e+00> : vector<8x10xf32>
    %22 = tpu.matmul %20, %11, %cst_8 {dimension_numbers = #tpu.dot_dimension_numbers<[1], [0], [0], [1], [0, 0, 1, 1], [], []>} : vector<8x10xf32>, vector<10x10xf32>, vector<8x10xf32> -> vector<8x10xf32>
    %23 = arith.addf %21, %22 : vector<8x10xf32>
    %24 = math.tanh %23 : vector<8x10xf32>
    %25 = vector.extract_strided_slice %10 {offsets = [24, 0], sizes = [8, 10], strides = [1, 1]} : vector<48x10xf32> to vector<8x10xf32>
    %cst_9 = arith.constant dense<0.000000e+00> : vector<8x10xf32>
    %26 = tpu.matmul %24, %11, %cst_9 {dimension_numbers = #tpu.dot_dimension_numbers<[1], [0], [0], [1], [0, 0, 1, 1], [], []>} : vector<8x10xf32>, vector<10x10xf32>, vector<8x10xf32> -> vector<8x10xf32>
    %27 = arith.addf %25, %26 : vector<8x10xf32>
    %28 = math.tanh %27 : vector<8x10xf32>
    %29 = vector.extract_strided_slice %10 {offsets = [32, 0], sizes = [8, 10], strides = [1, 1]} : vector<48x10xf32> to vector<8x10xf32>
    %cst_10 = arith.constant dense<0.000000e+00> : vector<8x10xf32>
    %30 = tpu.matmul %28, %11, %cst_10 {dimension_numbers = #tpu.dot_dimension_numbers<[1], [0], [0], [1], [0, 0, 1, 1], [], []>} : vector<8x10xf32>, vector<10x10xf32>, vector<8x10xf32> -> vector<8x10xf32>
    %31 = arith.addf %29, %30 : vector<8x10xf32>
    %32 = math.tanh %31 : vector<8x10xf32>
    %33 = vector.extract_strided_slice %10 {offsets = [40, 0], sizes = [8, 10], strides = [1, 1]} : vector<48x10xf32> to vector<8x10xf32>
    %cst_11 = arith.constant dense<0.000000e+00> : vector<8x10xf32>
    %34 = tpu.matmul %32, %11, %cst_11 {dimension_numbers = #tpu.dot_dimension_numbers<[1], [0], [0], [1], [0, 0, 1, 1], [], []>} : vector<8x10xf32>, vector<10x10xf32>, vector<8x10xf32> -> vector<8x10xf32>
    %35 = arith.addf %33, %34 : vector<8x10xf32>
    %36 = math.tanh %35 : vector<8x10xf32>
    %c0_12 = arith.constant 0 : index
    %c0_13 = arith.constant 0 : index
    %37 = vector.load %arg4[%c0_12, %c0_13] : memref<10x6xf32, #tpu.memory_space<vmem>>, vector<10x6xf32>
    %cst_14 = arith.constant dense<0.000000e+00> : vector<8x6xf32>
    %38 = tpu.matmul %36, %37, %cst_14 {dimension_numbers = #tpu.dot_dimension_numbers<[1], [0], [0], [1], [0, 0, 1, 1], [], []>} : vector<8x10xf32>, vector<10x6xf32>, vector<8x6xf32> -> vector<8x6xf32>
    %c0_15 = arith.constant 0 : index
    %c0_16 = arith.constant 0 : index
    %39 = vector.load %arg5[%c0_15, %c0_16] : memref<1x6xf32, #tpu.memory_space<vmem>>, vector<1x6xf32>
    %40 = vector.broadcast %39 : vector<1x6xf32> to vector<8x6xf32>
    %41 = arith.addf %38, %40 : vector<8x6xf32>
    %c0_17 = arith.constant 0 : index
    %c0_18 = arith.constant 0 : index
    %42 = vector.load %arg6[%c0_17, %c0_18] : memref<8x6xf32, #tpu.memory_space<vmem>>, vector<8x6xf32>
    tpu.vector_store %arg6[%c0_17, %c0_18], %41 {strides = array<i32>} : memref<8x6xf32, #tpu.memory_space<vmem>>, vector<8x6xf32>,
    return
  }
  func.func @transform_0(%arg0: i32) -> (i32, i32) {
    %c0_i32 = arith.constant 0 : i32
    %c0_i32_0 = arith.constant 0 : i32
    return %arg0, %c0_i32 : i32, i32
  }
  func.func @transform_1(%arg0: i32) -> (i32, i32) {
    %c0_i32 = arith.constant 0 : i32
    %c0_i32_0 = arith.constant 0 : i32
    %c0_i32_1 = arith.constant 0 : i32
    return %c0_i32, %c0_i32_0 : i32, i32
  }
  func.func @transform_2(%arg0: i32) -> (i32, i32) {
    %c0_i32 = arith.constant 0 : i32
    %c0_i32_0 = arith.constant 0 : i32
    %c0_i32_1 = arith.constant 0 : i32
    return %c0_i32, %c0_i32_0 : i32, i32
  }
  func.func @transform_3(%arg0: i32) -> (i32, i32) {
    %c0_i32 = arith.constant 0 : i32
    %c0_i32_0 = arith.constant 0 : i32
    %c0_i32_1 = arith.constant 0 : i32
    return %c0_i32, %c0_i32_0 : i32, i32
  }
  func.func @transform_4(%arg0: i32) -> (i32, i32) {
    %c0_i32 = arith.constant 0 : i32
    %c0_i32_0 = arith.constant 0 : i32
    %c0_i32_1 = arith.constant 0 : i32
    return %c0_i32, %c0_i32_0 : i32, i32
  }
  func.func @transform_5(%arg0: i32) -> (i32, i32) {
    %c0_i32 = arith.constant 0 : i32
    %c0_i32_0 = arith.constant 0 : i32
    return %arg0, %c0_i32 : i32, i32
  }
}

</mosaic_0001>

<llo_original>
// kernel: torch_model_forward.1
$region0: #{torch_model_forward.1}
  #allocation0 [shape = 'u32[]', space=smem, size = 0x4, offset = 0x4, fixed_abs, tag = 'smem constant byte address 0x4 - core index']
  #allocation1 [shape = 'u32[144,128]{1,0:T(1,128)}', space=vmem, size = 0x12000, scoped, tag = 'internal scratch']
  %s0 = inlined_call_operand.vmem [shape: s32[8,6], index: 0, kind: input, shape index: {}]
  %s1 = inlined_call_operand.vmem [shape: f32[28,10], index: 1, kind: input, shape index: {}]
  %s2 = inlined_call_operand.vmem [shape: f32[10,10], index: 2, kind: input, shape index: {}]
  %s3 = inlined_call_operand.vmem [shape: f32[10,6], index: 3, kind: input, shape index: {}]
  %s4 = inlined_call_operand.vmem [shape: f32[1,6], index: 4, kind: input, shape index: {}]
  %s5 = inlined_call_operand.hbm [shape: f32[8,6], index: 5, kind: output, shape index: {}]
  %s6 = sld [smem:[#allocation0]]
  $region30: #{torch_model_forward.1} parent=0
    _
  %s8 = ssub.s32 1, %s6
  %s9 = scalar_select 0, %s8, %s6
  $region1: #{torch_model_forward.1} parent=0
    #allocation2 [shape = 'u8[4096]{0}', space=vmem, size = 0x1000, scoped, tag = 'output window, operand 0, single buffered']
    #allocation3 [shape = 's32[1]{0}', space=sflag, size = 0x4, scoped, tag = 'scoped memory for torch_model_forward.1']
    %10 = vsyncpa [#allocation3], 0
    // Predicated region
    $region2: #{torch_model_forward.1} parent=1 // pred_check
      _
    $region3: #{torch_model_forward.1} parent=1 // pred_check_branch
      %12 = sbr.rel (0) target = $region5
    $region4: #{torch_model_forward.1} parent=1 // pred_region
      _
    $region5: #{torch_model_forward.1} parent=1 // pred_fallthru
      _
    // Predicated region
    $region6: #{torch_model_forward.1} parent=1 // pred_check
      _
    $region7: #{torch_model_forward.1} parent=1 // pred_check_branch
      %14 = sbr.rel (0) target = $region9
    $region8: #{torch_model_forward.1} parent=1 // pred_region
      _
    $region9: #{torch_model_forward.1} parent=1 // pred_fallthru
      _
    // Predicated region
    $region10: #{torch_model_forward.1} parent=1 // pred_check
      _
    $region11: #{torch_model_forward.1} parent=1 // pred_check_branch
      %16 = sbr.rel (0) target = $region13
    $region12: #{torch_model_forward.1} parent=1 // pred_region
      _
    $region13: #{torch_model_forward.1} parent=1 // pred_fallthru
      _
    // Predicated region
    $region14: #{torch_model_forward.1} parent=1 // pred_check
      _
    $region15: #{torch_model_forward.1} parent=1 // pred_check_branch
      %18 = sbr.rel (0) target = $region17
    $region16: #{torch_model_forward.1} parent=1 // pred_region
      _
    $region17: #{torch_model_forward.1} parent=1 // pred_fallthru
      _
    // Predicated region
    $region18: #{torch_model_forward.1} parent=1 // pred_check
      _
    $region19: #{torch_model_forward.1} parent=1 // pred_check_branch
      %20 = sbr.rel (0) target = $region21
    $region20: #{torch_model_forward.1} parent=1 // pred_region
      _
    $region21: #{torch_model_forward.1} parent=1 // pred_fallthru
      _
    %v21 = vld [vmem:[%s0] sm:$0xff]
    %22 = vxpose.xlu0.b32.start [1/16] %v21, 128
    %23 = vxpose.xlu0.b32.cont [2/16] 0, 128
    %24 = vxpose.xlu0.b32.cont [3/16] 0, 128
    %25 = vxpose.xlu0.b32.cont [4/16] 0, 128
    %26 = vxpose.xlu0.b32.cont [5/16] 0, 128
    %27 = vxpose.xlu0.b32.cont [6/16] 0, 128
    %28 = vxpose.xlu0.b32.cont [7/16] 0, 128
    %29 = vxpose.xlu0.b32.cont [8/16] 0, 128
    %30 = vxpose.xlu0.b32.cont [9/16] 0, 128
    %31 = vxpose.xlu0.b32.cont [10/16] 0, 128
    %32 = vxpose.xlu0.b32.cont [11/16] 0, 128
    %33 = vxpose.xlu0.b32.cont [12/16] 0, 128
    %34 = vxpose.xlu0.b32.cont [13/16] 0, 128
    %35 = vxpose.xlu0.b32.cont [14/16] 0, 128
    %36 = vxpose.xlu0.b32.cont [15/16] 0, 128
    %37 = vxpose.xlu0.b32.end [16/16] 0, 128
    %v38 = vpop.trf.xlu0
    %v39 = vpop.trf.xlu0
    %v40 = vpop.trf.xlu0
    %v41 = vpop.trf.xlu0
    %v42 = vpop.trf.xlu0
    %v43 = vpop.trf.xlu0
    %v44 = vpop.trf.xlu0
    %v45 = vpop.trf.xlu0
    %v46 = vpop.trf.xlu0
    %v47 = vpop.trf.xlu0
    %v48 = vpop.trf.xlu0
    %v49 = vpop.trf.xlu0
    %v50 = vpop.trf.xlu0
    %v51 = vpop.trf.xlu0
    %v52 = vpop.trf.xlu0
    %v53 = vpop.trf.xlu0
    %v54 = vlaneseq
    %v55 = vshrl.u32 %v54, 7
    %v56 = vsub.s32 0, %v55
    %v57 = vrot.slane %v38, %v56
    %59 = vbcast.lane.b32.xlu0 %v57, 256
    %v60 = vpop.permute.xlu0 %59
    %v61 = vlaneseq
    %v62 = vshrl.u32 %v61, 7
    %v63 = vsub.s32 1, %v62
    %v64 = vrot.slane %v38, %v63
    %66 = vbcast.lane.b32.xlu0 %v64, 256
    %v67 = vpop.permute.xlu0 %66
    %v68 = vlaneseq
    %v69 = vshrl.u32 %v68, 7
    %v70 = vsub.s32 2, %v69
    %v71 = vrot.slane %v38, %v70
    %73 = vbcast.lane.b32.xlu0 %v71, 256
    %v74 = vpop.permute.xlu0 %73
    %v75 = vlaneseq
    %v76 = vshrl.u32 %v75, 7
    %v77 = vsub.s32 3, %v76
    %v78 = vrot.slane %v38, %v77
    %80 = vbcast.lane.b32.xlu0 %v78, 256
    %v81 = vpop.permute.xlu0 %80
    %v82 = vlaneseq
    %v83 = vshrl.u32 %v82, 7
    %v84 = vsub.s32 4, %v83
    %v85 = vrot.slane %v38, %v84
    %87 = vbcast.lane.b32.xlu0 %v85, 256
    %v88 = vpop.permute.xlu0 %87
    %v89 = vlaneseq
    %v90 = vshrl.u32 %v89, 7
    %v91 = vsub.s32 5, %v90
    %v92 = vrot.slane %v38, %v91
    %94 = vbcast.lane.b32.xlu0 %v92, 256
    %v95 = vpop.permute.xlu0 %94
    %v96 = vlaneseq
    %v97 = vand.u32 %v96, 127
    %vm98 = vcmp.eq.s32.totalorder %v60, %v97
    %vm99 = vcmp.eq.s32.totalorder %v67, %v97
    %vm100 = vcmp.eq.s32.totalorder %v74, %v97
    %vm101 = vcmp.eq.s32.totalorder %v81, %v97
    %vm102 = vcmp.eq.s32.totalorder %v88, %v97
    %vm103 = vcmp.eq.s32.totalorder %v95, %v97
    %v104 = vsel %vm98, 1, 0
    %v105 = vsel %vm99, 1, 0
    %v106 = vsel %vm100, 1, 0
    %v107 = vsel %vm101, 1, 0
    %v108 = vsel %vm102, 1, 0
    %v109 = vsel %vm103, 1, 0
    %v110 = vcvt.s32.f32 %v104
    %v111 = vcvt.s32.f32 %v105
    %v112 = vcvt.s32.f32 %v106
    %v113 = vcvt.s32.f32 %v107
    %v114 = vcvt.s32.f32 %v108
    %v115 = vcvt.s32.f32 %v109
    %v116 = vld [vmem:[%s1] sm:$0xff]
    %v117 = vld [vmem:[%s1 + $0x8] sm:$0xff]
    %v118 = vld [vmem:[%s1 + $0x10] sm:$0xff]
    %v119 = vld [vmem:[%s1 + $0x18] sm:$0xf]
    %vm120 = vcmask 228352
    %v122 = vsel %vm120, %v110, 0
    %v125 = vsel %vm120, %v111, 0
    %v128 = vsel %vm120, %v112, 0
    %v131 = vsel %vm120, %v113, 0
    %v134 = vsel %vm120, %v114, 0
    %v137 = vsel %vm120, %v115, 0
    %vm139 = vcmask 1043456
    %v141 = vsel %vm139, %v119, 0
    %143 = vmatprep.subr.mxu0 0.0
    %144 = vmatpush1.msra.mxu0 0.0
    %145 = vmatprep.subr.mxu0 0.0
    %146 = vmatpush1.msra.mxu0 0.0
    %147 = vmatprep.subr.mxu0 0.0
    %148 = vmatpush1.msra.mxu0 0.0
    %149 = vmatprep.subr.mxu0 0.0
    %150 = vmatpush1.msra.mxu0 0.0
    %151 = vmatprep.subr.mxu0 0.0
    %152 = vmatpush1.msra.mxu0 0.0
    %153 = vmatprep.subr.mxu0 0.0
    %154 = vmatpush1.msra.mxu0 0.0
    %155 = vmatprep.subr.mxu0 0.0
    %156 = vmatpush1.msra.mxu0 0.0
    %157 = vmatprep.subr.mxu0 0.0
    %158 = vmatpush1.msra.mxu0 0.0
    %159 = vmatprep.subr.mxu0 0.0
    %160 = vmatpush1.msra.mxu0 0.0
    %161 = vmatprep.subr.mxu0 0.0
    %162 = vmatpush1.msra.mxu0 0.0
    %163 = vmatprep.subr.mxu0 0.0
    %164 = vmatpush1.msra.mxu0 0.0
    %165 = vmatprep.subr.mxu0 0.0
    %166 = vmatpush1.msra.mxu0 0.0
    %167 = vmatprep.subr.mxu0 0.0
    %168 = vmatpush1.msra.mxu0 %v141
    %169 = vmatprep.subr.mxu0 0.0
    %170 = vmatpush1.msra.mxu0 %v118
    %171 = vmatprep.subr.mxu0 0.0
    %172 = vmatpush1.msra.mxu0 %v117
    %173 = vmatprep.subr.mxu0 0.0
    %174 = vmatpush1.msra.mxu0 %v116
    %175 = vmatprep.subr.mxu0 0.0
    %176 = vmatpush2.msra.mxu0 0.0
    %177 = vmatprep.subr.mxu0 0.0
    %178 = vmatpush2.msra.mxu0 0.0
    %179 = vmatprep.subr.mxu0 0.0
    %180 = vmatpush2.msra.mxu0 0.0
    %181 = vmatprep.subr.mxu0 0.0
    %182 = vmatpush2.msra.mxu0 0.0
    %183 = vmatprep.subr.mxu0 0.0
    %184 = vmatpush2.msra.mxu0 0.0
    %185 = vmatprep.subr.mxu0 0.0
    %186 = vmatpush2.msra.mxu0 0.0
    %187 = vmatprep.subr.mxu0 0.0
    %188 = vmatpush2.msra.mxu0 0.0
    %189 = vmatprep.subr.mxu0 0.0
    %190 = vmatpush2.msra.mxu0 0.0
    %191 = vmatprep.subr.mxu0 0.0
    %192 = vmatpush2.msra.mxu0 0.0
    %193 = vmatprep.subr.mxu0 0.0
    %194 = vmatpush2.msra.mxu0 0.0
    %195 = vmatprep.subr.mxu0 0.0
    %196 = vmatpush2.msra.mxu0 0.0
    %197 = vmatprep.subr.mxu0 0.0
    %198 = vmatpush2.msra.mxu0 0.0
    %199 = vmatprep.subr.mxu0 0.0
    %200 = vmatpush2.msra.mxu0 0.0
    %201 = vmatprep.subr.mxu0 0.0
    %202 = vmatpush2.msra.mxu0 0.0
    %203 = vmatprep.subr.mxu0 0.0
    %204 = vmatpush2.msra.mxu0 0.0
    %205 = vmatprep.subr.mxu0 0.0
    %206 = vmatpush2.msra.mxu0 0.0
    %207 = vmatprep.mubr.f32.mxu0 0.0
    %208 = vmatmul.mubr.f32.gmra.mxu0 %v122
    %v209 = vpop.f32.mrf.mxu0
    %v210 = vadd.f32 0.0, %v209
    %v211 = vpop.f32.mrf.mxu0
    %212 = vmatprep.mubr.f32.mxu0 0.0
    %213 = vmatmul.mubr.f32.gmra.mxu0 %v125
    %v214 = vpop.f32.mrf.mxu0
    %v215 = vadd.f32 0.0, %v214
    %v216 = vpop.f32.mrf.mxu0
    %217 = vmatprep.mubr.f32.mxu0 0.0
    %218 = vmatmul.mubr.f32.gmra.mxu0 %v128
    %v219 = vpop.f32.mrf.mxu0
    %v220 = vadd.f32 0.0, %v219
    %v221 = vpop.f32.mrf.mxu0
    %222 = vmatprep.mubr.f32.mxu0 0.0
    %223 = vmatmul.mubr.f32.gmra.mxu0 %v131
    %v224 = vpop.f32.mrf.mxu0
    %v225 = vadd.f32 0.0, %v224
    %v226 = vpop.f32.mrf.mxu0
    %227 = vmatprep.mubr.f32.mxu0 0.0
    %228 = vmatmul.mubr.f32.gmra.mxu0 %v134
    %v229 = vpop.f32.mrf.mxu0
    %v230 = vadd.f32 0.0, %v229
    %v231 = vpop.f32.mrf.mxu0
    %232 = vmatprep.mubr.f32.mxu0 0.0
    %233 = vmatmul.mubr.f32.gmra.mxu0 %v137
    %v234 = vpop.f32.mrf.mxu0
    %v235 = vadd.f32 0.0, %v234
    %v236 = vpop.f32.mrf.mxu0
    %237 = vdwg.mxu0
    %v238 = vld [vmem:[%s2] sm:$0xff]
    %v239 = vld [vmem:[%s2 + $0x8] sm:$0x3]
    %vm240 = vcmask 80896
    %v242 = vsel %vm240, 0.0, 0
    %vm244 = vcmask 1041408
    %v246 = vsel %vm244, %v239, 0
    %248 = vmatprep.subr.mxu0 0.0
    %249 = vmatpush1.msra.mxu0 0.0
    %250 = vmatprep.subr.mxu0 0.0
    %251 = vmatpush1.msra.mxu0 0.0
    %252 = vmatprep.subr.mxu0 0.0
    %253 = vmatpush1.msra.mxu0 0.0
    %254 = vmatprep.subr.mxu0 0.0
    %255 = vmatpush1.msra.mxu0 0.0
    %256 = vmatprep.subr.mxu0 0.0
    %257 = vmatpush1.msra.mxu0 0.0
    %258 = vmatprep.subr.mxu0 0.0
    %259 = vmatpush1.msra.mxu0 0.0
    %260 = vmatprep.subr.mxu0 0.0
    %261 = vmatpush1.msra.mxu0 0.0
    %262 = vmatprep.subr.mxu0 0.0
    %263 = vmatpush1.msra.mxu0 0.0
    %264 = vmatprep.subr.mxu0 0.0
    %265 = vmatpush1.msra.mxu0 0.0
    %266 = vmatprep.subr.mxu0 0.0
    %267 = vmatpush1.msra.mxu0 0.0
    %268 = vmatprep.subr.mxu0 0.0
    %269 = vmatpush1.msra.mxu0 0.0
    %270 = vmatprep.subr.mxu0 0.0
    %271 = vmatpush1.msra.mxu0 0.0
    %272 = vmatprep.subr.mxu0 0.0
    %273 = vmatpush1.msra.mxu0 0.0
    %274 = vmatprep.subr.mxu0 0.0
    %275 = vmatpush1.msra.mxu0 0.0
    %276 = vmatprep.subr.mxu0 0.0
    %277 = vmatpush1.msra.mxu0 %v246
    %278 = vmatprep.subr.mxu0 0.0
    %279 = vmatpush1.msra.mxu0 %v238
    %280 = vmatprep.subr.mxu0 0.0
    %281 = vmatpush2.msra.mxu0 0.0
    %282 = vmatprep.subr.mxu0 0.0
    %283 = vmatpush2.msra.mxu0 0.0
    %284 = vmatprep.subr.mxu0 0.0
    %285 = vmatpush2.msra.mxu0 0.0
    %286 = vmatprep.subr.mxu0 0.0
    %287 = vmatpush2.msra.mxu0 0.0
    %288 = vmatprep.subr.mxu0 0.0
    %289 = vmatpush2.msra.mxu0 0.0
    %290 = vmatprep.subr.mxu0 0.0
    %291 = vmatpush2.msra.mxu0 0.0
    %292 = vmatprep.subr.mxu0 0.0
    %293 = vmatpush2.msra.mxu0 0.0
    %294 = vmatprep.subr.mxu0 0.0
    %295 = vmatpush2.msra.mxu0 0.0
    %296 = vmatprep.subr.mxu0 0.0
    %297 = vmatpush2.msra.mxu0 0.0
    %298 = vmatprep.subr.mxu0 0.0
    %299 = vmatpush2.msra.mxu0 0.0
    %300 = vmatprep.subr.mxu0 0.0
    %301 = vmatpush2.msra.mxu0 0.0
    %302 = vmatprep.subr.mxu0 0.0
    %303 = vmatpush2.msra.mxu0 0.0
    %304 = vmatprep.subr.mxu0 0.0
    %305 = vmatpush2.msra.mxu0 0.0
    %306 = vmatprep.subr.mxu0 0.0
    %307 = vmatpush2.msra.mxu0 0.0
    %308 = vmatprep.subr.mxu0 0.0
    %309 = vmatpush2.msra.mxu0 0.0
    %310 = vmatprep.subr.mxu0 0.0
    %311 = vmatpush2.msra.mxu0 0.0
    %312 = vmatprep.mubr.f32.mxu0 0.0
    %313 = vmatmul.mubr.f32.gmra.mxu0 %v242
    %v314 = vpop.f32.mrf.mxu0
    %v315 = vadd.f32 0.0, %v314
    %v316 = vpop.f32.mrf.mxu0
    %317 = vdwg.mxu0
    %v318 = vadd.f32 %v210, %v315
    %v319 = vtanh.pop %v318
    %v321 = vsel %vm240, %v319, 0
    %323 = vmatprep.subr.mxu0 0.0
    %324 = vmatpush1.msra.mxu0 0.0
    %325 = vmatprep.subr.mxu0 0.0
    %326 = vmatpush1.msra.mxu0 0.0
    %327 = vmatprep.subr.mxu0 0.0
    %328 = vmatpush1.msra.mxu0 0.0
    %329 = vmatprep.subr.mxu0 0.0
    %330 = vmatpush1.msra.mxu0 0.0
    %331 = vmatprep.subr.mxu0 0.0
    %332 = vmatpush1.msra.mxu0 0.0
    %333 = vmatprep.subr.mxu0 0.0
    %334 = vmatpush1.msra.mxu0 0.0
    %335 = vmatprep.subr.mxu0 0.0
    %336 = vmatpush1.msra.mxu0 0.0
    %337 = vmatprep.subr.mxu0 0.0
    %338 = vmatpush1.msra.mxu0 0.0
    %339 = vmatprep.subr.mxu0 0.0
    %340 = vmatpush1.msra.mxu0 0.0
    %341 = vmatprep.subr.mxu0 0.0
    %342 = vmatpush1.msra.mxu0 0.0
    %343 = vmatprep.subr.mxu0 0.0
    %344 = vmatpush1.msra.mxu0 0.0
    %345 = vmatprep.subr.mxu0 0.0
    %346 = vmatpush1.msra.mxu0 0.0
    %347 = vmatprep.subr.mxu0 0.0
    %348 = vmatpush1.msra.mxu0 0.0
    %349 = vmatprep.subr.mxu0 0.0
    %350 = vmatpush1.msra.mxu0 0.0
    %351 = vmatprep.subr.mxu0 0.0
    %352 = vmatpush1.msra.mxu0 %v246
    %353 = vmatprep.subr.mxu0 0.0
    %354 = vmatpush1.msra.mxu0 %v238
    %355 = vmatprep.subr.mxu0 0.0
    %356 = vmatpush2.msra.mxu0 0.0
    %357 = vmatprep.subr.mxu0 0.0
    %358 = vmatpush2.msra.mxu0 0.0
    %359 = vmatprep.subr.mxu0 0.0
    %360 = vmatpush2.msra.mxu0 0.0
    %361 = vmatprep.subr.mxu0 0.0
    %362 = vmatpush2.msra.mxu0 0.0
    %363 = vmatprep.subr.mxu0 0.0
    %364 = vmatpush2.msra.mxu0 0.0
    %365 = vmatprep.subr.mxu0 0.0
    %366 = vmatpush2.msra.mxu0 0.0
    %367 = vmatprep.subr.mxu0 0.0
    %368 = vmatpush2.msra.mxu0 0.0
    %369 = vmatprep.subr.mxu0 0.0
    %370 = vmatpush2.msra.mxu0 0.0
    %371 = vmatprep.subr.mxu0 0.0
    %372 = vmatpush2.msra.mxu0 0.0
    %373 = vmatprep.subr.mxu0 0.0
    %374 = vmatpush2.msra.mxu0 0.0
    %375 = vmatprep.subr.mxu0 0.0
    %376 = vmatpush2.msra.mxu0 0.0
    %377 = vmatprep.subr.mxu0 0.0
    %378 = vmatpush2.msra.mxu0 0.0
    %379 = vmatprep.subr.mxu0 0.0
    %380 = vmatpush2.msra.mxu0 0.0
    %381 = vmatprep.subr.mxu0 0.0
    %382 = vmatpush2.msra.mxu0 0.0
    %383 = vmatprep.subr.mxu0 0.0
    %384 = vmatpush2.msra.mxu0 0.0
    %385 = vmatprep.subr.mxu0 0.0
    %386 = vmatpush2.msra.mxu0 0.0
    %387 = vmatprep.mubr.f32.mxu0 0.0
    %388 = vmatmul.mubr.f32.gmra.mxu0 %v321
    %v389 = vpop.f32.mrf.mxu0
    %v390 = vadd.f32 0.0, %v389
    %v391 = vpop.f32.mrf.mxu0
    %392 = vdwg.mxu0
    %v393 = vadd.f32 %v215, %v390
    %v394 = vtanh.pop %v393
    %v396 = vsel %vm240, %v394, 0
    %398 = vmatprep.subr.mxu0 0.0
    %399 = vmatpush1.msra.mxu0 0.0
    %400 = vmatprep.subr.mxu0 0.0
    %401 = vmatpush1.msra.mxu0 0.0
    %402 = vmatprep.subr.mxu0 0.0
    %403 = vmatpush1.msra.mxu0 0.0
    %404 = vmatprep.subr.mxu0 0.0
    %405 = vmatpush1.msra.mxu0 0.0
    %406 = vmatprep.subr.mxu0 0.0
    %407 = vmatpush1.msra.mxu0 0.0
    %408 = vmatprep.subr.mxu0 0.0
    %409 = vmatpush1.msra.mxu0 0.0
    %410 = vmatprep.subr.mxu0 0.0
    %411 = vmatpush1.msra.mxu0 0.0
    %412 = vmatprep.subr.mxu0 0.0
    %413 = vmatpush1.msra.mxu0 0.0
    %414 = vmatprep.subr.mxu0 0.0
    %415 = vmatpush1.msra.mxu0 0.0
    %416 = vmatprep.subr.mxu0 0.0
    %417 = vmatpush1.msra.mxu0 0.0
    %418 = vmatprep.subr.mxu0 0.0
    %419 = vmatpush1.msra.mxu0 0.0
    %420 = vmatprep.subr.mxu0 0.0
    %421 = vmatpush1.msra.mxu0 0.0
    %422 = vmatprep.subr.mxu0 0.0
    %423 = vmatpush1.msra.mxu0 0.0
    %424 = vmatprep.subr.mxu0 0.0
    %425 = vmatpush1.msra.mxu0 0.0
    %426 = vmatprep.subr.mxu0 0.0
    %427 = vmatpush1.msra.mxu0 %v246
    %428 = vmatprep.subr.mxu0 0.0
    %429 = vmatpush1.msra.mxu0 %v238
    %430 = vmatprep.subr.mxu0 0.0
    %431 = vmatpush2.msra.mxu0 0.0
    %432 = vmatprep.subr.mxu0 0.0
    %433 = vmatpush2.msra.mxu0 0.0
    %434 = vmatprep.subr.mxu0 0.0
    %435 = vmatpush2.msra.mxu0 0.0
    %436 = vmatprep.subr.mxu0 0.0
    %437 = vmatpush2.msra.mxu0 0.0
    %438 = vmatprep.subr.mxu0 0.0
    %439 = vmatpush2.msra.mxu0 0.0
    %440 = vmatprep.subr.mxu0 0.0
    %441 = vmatpush2.msra.mxu0 0.0
    %442 = vmatprep.subr.mxu0 0.0
    %443 = vmatpush2.msra.mxu0 0.0
    %444 = vmatprep.subr.mxu0 0.0
    %445 = vmatpush2.msra.mxu0 0.0
    %446 = vmatprep.subr.mxu0 0.0
    %447 = vmatpush2.msra.mxu0 0.0
    %448 = vmatprep.subr.mxu0 0.0
    %449 = vmatpush2.msra.mxu0 0.0
    %450 = vmatprep.subr.mxu0 0.0
    %451 = vmatpush2.msra.mxu0 0.0
    %452 = vmatprep.subr.mxu0 0.0
    %453 = vmatpush2.msra.mxu0 0.0
    %454 = vmatprep.subr.mxu0 0.0
    %455 = vmatpush2.msra.mxu0 0.0
    %456 = vmatprep.subr.mxu0 0.0
    %457 = vmatpush2.msra.mxu0 0.0
    %458 = vmatprep.subr.mxu0 0.0
    %459 = vmatpush2.msra.mxu0 0.0
    %460 = vmatprep.subr.mxu0 0.0
    %461 = vmatpush2.msra.mxu0 0.0
    %462 = vmatprep.mubr.f32.mxu0 0.0
    %463 = vmatmul.mubr.f32.gmra.mxu0 %v396
    %v464 = vpop.f32.mrf.mxu0
    %v465 = vadd.f32 0.0, %v464
    %v466 = vpop.f32.mrf.mxu0
    %467 = vdwg.mxu0
    %v468 = vadd.f32 %v220, %v465
    %v469 = vtanh.pop %v468
    %v471 = vsel %vm240, %v469, 0
    %473 = vmatprep.subr.mxu0 0.0
    %474 = vmatpush1.msra.mxu0 0.0
    %475 = vmatprep.subr.mxu0 0.0
    %476 = vmatpush1.msra.mxu0 0.0
    %477 = vmatprep.subr.mxu0 0.0
    %478 = vmatpush1.msra.mxu0 0.0
    %479 = vmatprep.subr.mxu0 0.0
    %480 = vmatpush1.msra.mxu0 0.0
    %481 = vmatprep.subr.mxu0 0.0
    %482 = vmatpush1.msra.mxu0 0.0
    %483 = vmatprep.subr.mxu0 0.0
    %484 = vmatpush1.msra.mxu0 0.0
    %485 = vmatprep.subr.mxu0 0.0
    %486 = vmatpush1.msra.mxu0 0.0
    %487 = vmatprep.subr.mxu0 0.0
    %488 = vmatpush1.msra.mxu0 0.0
    %489 = vmatprep.subr.mxu0 0.0
    %490 = vmatpush1.msra.mxu0 0.0
    %491 = vmatprep.subr.mxu0 0.0
    %492 = vmatpush1.msra.mxu0 0.0
    %493 = vmatprep.subr.mxu0 0.0
    %494 = vmatpush1.msra.mxu0 0.0
    %495 = vmatprep.subr.mxu0 0.0
    %496 = vmatpush1.msra.mxu0 0.0
    %497 = vmatprep.subr.mxu0 0.0
    %498 = vmatpush1.msra.mxu0 0.0
    %499 = vmatprep.subr.mxu0 0.0
    %500 = vmatpush1.msra.mxu0 0.0
    %501 = vmatprep.subr.mxu0 0.0
    %502 = vmatpush1.msra.mxu0 %v246
    %503 = vmatprep.subr.mxu0 0.0
    %504 = vmatpush1.msra.mxu0 %v238
    %505 = vmatprep.subr.mxu0 0.0
    %506 = vmatpush2.msra.mxu0 0.0
    %507 = vmatprep.subr.mxu0 0.0
    %508 = vmatpush2.msra.mxu0 0.0
    %509 = vmatprep.subr.mxu0 0.0
    %510 = vmatpush2.msra.mxu0 0.0
    %511 = vmatprep.subr.mxu0 0.0
    %512 = vmatpush2.msra.mxu0 0.0
    %513 = vmatprep.subr.mxu0 0.0
    %514 = vmatpush2.msra.mxu0 0.0
    %515 = vmatprep.subr.mxu0 0.0
    %516 = vmatpush2.msra.mxu0 0.0
    %517 = vmatprep.subr.mxu0 0.0
    %518 = vmatpush2.msra.mxu0 0.0
    %519 = vmatprep.subr.mxu0 0.0
    %520 = vmatpush2.msra.mxu0 0.0
    %521 = vmatprep.subr.mxu0 0.0
    %522 = vmatpush2.msra.mxu0 0.0
    %523 = vmatprep.subr.mxu0 0.0
    %524 = vmatpush2.msra.mxu0 0.0
    %525 = vmatprep.subr.mxu0 0.0
    %526 = vmatpush2.msra.mxu0 0.0
    %527 = vmatprep.subr.mxu0 0.0
    %528 = vmatpush2.msra.mxu0 0.0
    %529 = vmatprep.subr.mxu0 0.0
    %530 = vmatpush2.msra.mxu0 0.0
    %531 = vmatprep.subr.mxu0 0.0
    %532 = vmatpush2.msra.mxu0 0.0
    %533 = vmatprep.subr.mxu0 0.0
    %534 = vmatpush2.msra.mxu0 0.0
    %535 = vmatprep.subr.mxu0 0.0
    %536 = vmatpush2.msra.mxu0 0.0
    %537 = vmatprep.mubr.f32.mxu0 0.0
    %538 = vmatmul.mubr.f32.gmra.mxu0 %v471
    %v539 = vpop.f32.mrf.mxu0
    %v540 = vadd.f32 0.0, %v539
    %v541 = vpop.f32.mrf.mxu0
    %542 = vdwg.mxu0
    %v543 = vadd.f32 %v225, %v540
    %v544 = vtanh.pop %v543
    %v546 = vsel %vm240, %v544, 0
    %548 = vmatprep.subr.mxu0 0.0
    %549 = vmatpush1.msra.mxu0 0.0
    %550 = vmatprep.subr.mxu0 0.0
    %551 = vmatpush1.msra.mxu0 0.0
    %552 = vmatprep.subr.mxu0 0.0
    %553 = vmatpush1.msra.mxu0 0.0
    %554 = vmatprep.subr.mxu0 0.0
    %555 = vmatpush1.msra.mxu0 0.0
    %556 = vmatprep.subr.mxu0 0.0
    %557 = vmatpush1.msra.mxu0 0.0
    %558 = vmatprep.subr.mxu0 0.0
    %559 = vmatpush1.msra.mxu0 0.0
    %560 = vmatprep.subr.mxu0 0.0
    %561 = vmatpush1.msra.mxu0 0.0
    %562 = vmatprep.subr.mxu0 0.0
    %563 = vmatpush1.msra.mxu0 0.0
    %564 = vmatprep.subr.mxu0 0.0
    %565 = vmatpush1.msra.mxu0 0.0
    %566 = vmatprep.subr.mxu0 0.0
    %567 = vmatpush1.msra.mxu0 0.0
    %568 = vmatprep.subr.mxu0 0.0
    %569 = vmatpush1.msra.mxu0 0.0
    %570 = vmatprep.subr.mxu0 0.0
    %571 = vmatpush1.msra.mxu0 0.0
    %572 = vmatprep.subr.mxu0 0.0
    %573 = vmatpush1.msra.mxu0 0.0
    %574 = vmatprep.subr.mxu0 0.0
    %575 = vmatpush1.msra.mxu0 0.0
    %576 = vmatprep.subr.mxu0 0.0
    %577 = vmatpush1.msra.mxu0 %v246
    %578 = vmatprep.subr.mxu0 0.0
    %579 = vmatpush1.msra.mxu0 %v238
    %580 = vmatprep.subr.mxu0 0.0
    %581 = vmatpush2.msra.mxu0 0.0
    %582 = vmatprep.subr.mxu0 0.0
    %583 = vmatpush2.msra.mxu0 0.0
    %584 = vmatprep.subr.mxu0 0.0
    %585 = vmatpush2.msra.mxu0 0.0
    %586 = vmatprep.subr.mxu0 0.0
    %587 = vmatpush2.msra.mxu0 0.0
    %588 = vmatprep.subr.mxu0 0.0
    %589 = vmatpush2.msra.mxu0 0.0
    %590 = vmatprep.subr.mxu0 0.0
    %591 = vmatpush2.msra.mxu0 0.0
    %592 = vmatprep.subr.mxu0 0.0
    %593 = vmatpush2.msra.mxu0 0.0
    %594 = vmatprep.subr.mxu0 0.0
    %595 = vmatpush2.msra.mxu0 0.0
    %596 = vmatprep.subr.mxu0 0.0
    %597 = vmatpush2.msra.mxu0 0.0
    %598 = vmatprep.subr.mxu0 0.0
    %599 = vmatpush2.msra.mxu0 0.0
    %600 = vmatprep.subr.mxu0 0.0
    %601 = vmatpush2.msra.mxu0 0.0
    %602 = vmatprep.subr.mxu0 0.0
    %603 = vmatpush2.msra.mxu0 0.0
    %604 = vmatprep.subr.mxu0 0.0
    %605 = vmatpush2.msra.mxu0 0.0
    %606 = vmatprep.subr.mxu0 0.0
    %607 = vmatpush2.msra.mxu0 0.0
    %608 = vmatprep.subr.mxu0 0.0
    %609 = vmatpush2.msra.mxu0 0.0
    %610 = vmatprep.subr.mxu0 0.0
    %611 = vmatpush2.msra.mxu0 0.0
    %612 = vmatprep.mubr.f32.mxu0 0.0
    %613 = vmatmul.mubr.f32.gmra.mxu0 %v546
    %v614 = vpop.f32.mrf.mxu0
    %v615 = vadd.f32 0.0, %v614
    %v616 = vpop.f32.mrf.mxu0
    %617 = vdwg.mxu0
    %v618 = vadd.f32 %v230, %v615
    %v619 = vtanh.pop %v618
    %v621 = vsel %vm240, %v619, 0
    %623 = vmatprep.subr.mxu0 0.0
    %624 = vmatpush1.msra.mxu0 0.0
    %625 = vmatprep.subr.mxu0 0.0
    %626 = vmatpush1.msra.mxu0 0.0
    %627 = vmatprep.subr.mxu0 0.0
    %628 = vmatpush1.msra.mxu0 0.0
    %629 = vmatprep.subr.mxu0 0.0
    %630 = vmatpush1.msra.mxu0 0.0
    %631 = vmatprep.subr.mxu0 0.0
    %632 = vmatpush1.msra.mxu0 0.0
    %633 = vmatprep.subr.mxu0 0.0
    %634 = vmatpush1.msra.mxu0 0.0
    %635 = vmatprep.subr.mxu0 0.0
    %636 = vmatpush1.msra.mxu0 0.0
    %637 = vmatprep.subr.mxu0 0.0
    %638 = vmatpush1.msra.mxu0 0.0
    %639 = vmatprep.subr.mxu0 0.0
    %640 = vmatpush1.msra.mxu0 0.0
    %641 = vmatprep.subr.mxu0 0.0
    %642 = vmatpush1.msra.mxu0 0.0
    %643 = vmatprep.subr.mxu0 0.0
    %644 = vmatpush1.msra.mxu0 0.0
    %645 = vmatprep.subr.mxu0 0.0
    %646 = vmatpush1.msra.mxu0 0.0
    %647 = vmatprep.subr.mxu0 0.0
    %648 = vmatpush1.msra.mxu0 0.0
    %649 = vmatprep.subr.mxu0 0.0
    %650 = vmatpush1.msra.mxu0 0.0
    %651 = vmatprep.subr.mxu0 0.0
    %652 = vmatpush1.msra.mxu0 %v246
    %653 = vmatprep.subr.mxu0 0.0
    %654 = vmatpush1.msra.mxu0 %v238
    %655 = vmatprep.subr.mxu0 0.0
    %656 = vmatpush2.msra.mxu0 0.0
    %657 = vmatprep.subr.mxu0 0.0
    %658 = vmatpush2.msra.mxu0 0.0
    %659 = vmatprep.subr.mxu0 0.0
    %660 = vmatpush2.msra.mxu0 0.0
    %661 = vmatprep.subr.mxu0 0.0
    %662 = vmatpush2.msra.mxu0 0.0
    %663 = vmatprep.subr.mxu0 0.0
    %664 = vmatpush2.msra.mxu0 0.0
    %665 = vmatprep.subr.mxu0 0.0
    %666 = vmatpush2.msra.mxu0 0.0
    %667 = vmatprep.subr.mxu0 0.0
    %668 = vmatpush2.msra.mxu0 0.0
    %669 = vmatprep.subr.mxu0 0.0
    %670 = vmatpush2.msra.mxu0 0.0
    %671 = vmatprep.subr.mxu0 0.0
    %672 = vmatpush2.msra.mxu0 0.0
    %673 = vmatprep.subr.mxu0 0.0
    %674 = vmatpush2.msra.mxu0 0.0
    %675 = vmatprep.subr.mxu0 0.0
    %676 = vmatpush2.msra.mxu0 0.0
    %677 = vmatprep.subr.mxu0 0.0
    %678 = vmatpush2.msra.mxu0 0.0
    %679 = vmatprep.subr.mxu0 0.0
    %680 = vmatpush2.msra.mxu0 0.0
    %681 = vmatprep.subr.mxu0 0.0
    %682 = vmatpush2.msra.mxu0 0.0
    %683 = vmatprep.subr.mxu0 0.0
    %684 = vmatpush2.msra.mxu0 0.0
    %685 = vmatprep.subr.mxu0 0.0
    %686 = vmatpush2.msra.mxu0 0.0
    %687 = vmatprep.mubr.f32.mxu0 0.0
    %688 = vmatmul.mubr.f32.gmra.mxu0 %v621
    %v689 = vpop.f32.mrf.mxu0
    %v690 = vadd.f32 0.0, %v689
    %v691 = vpop.f32.mrf.mxu0
    %692 = vdwg.mxu0
    %v693 = vadd.f32 %v235, %v690
    %v694 = vtanh.pop %v693
    %v695 = vld [vmem:[%s3] sm:$0xff]
    %v696 = vld [vmem:[%s3 + $0x8] sm:$0x3]
    %v697 = vld [vmem:[%s4] sm:$0x1]
    %v699 = vlaneseq
    %v700 = vshrl.u32 %v699, 7
    %v701 = vsub.s32 0, %v700
    %v702 = vrot.slane %v697, %v701
    %v705 = vsel %vm240, %v694, 0
    %v708 = vsel %vm244, %v696, 0
    %710 = vmatprep.subr.mxu0 0.0
    %711 = vmatpush1.msra.mxu0 0.0
    %712 = vmatprep.subr.mxu0 0.0
    %713 = vmatpush1.msra.mxu0 0.0
    %714 = vmatprep.subr.mxu0 0.0
    %715 = vmatpush1.msra.mxu0 0.0
    %716 = vmatprep.subr.mxu0 0.0
    %717 = vmatpush1.msra.mxu0 0.0
    %718 = vmatprep.subr.mxu0 0.0
    %719 = vmatpush1.msra.mxu0 0.0
    %720 = vmatprep.subr.mxu0 0.0
    %721 = vmatpush1.msra.mxu0 0.0
    %722 = vmatprep.subr.mxu0 0.0
    %723 = vmatpush1.msra.mxu0 0.0
    %724 = vmatprep.subr.mxu0 0.0
    %725 = vmatpush1.msra.mxu0 0.0
    %726 = vmatprep.subr.mxu0 0.0
    %727 = vmatpush1.msra.mxu0 0.0
    %728 = vmatprep.subr.mxu0 0.0
    %729 = vmatpush1.msra.mxu0 0.0
    %730 = vmatprep.subr.mxu0 0.0
    %731 = vmatpush1.msra.mxu0 0.0
    %732 = vmatprep.subr.mxu0 0.0
    %733 = vmatpush1.msra.mxu0 0.0
    %734 = vmatprep.subr.mxu0 0.0
    %735 = vmatpush1.msra.mxu0 0.0
    %736 = vmatprep.subr.mxu0 0.0
    %737 = vmatpush1.msra.mxu0 0.0
    %738 = vmatprep.subr.mxu0 0.0
    %739 = vmatpush1.msra.mxu0 %v708
    %740 = vmatprep.subr.mxu0 0.0
    %741 = vmatpush1.msra.mxu0 %v695
    %742 = vmatprep.subr.mxu0 0.0
    %743 = vmatpush2.msra.mxu0 0.0
    %744 = vmatprep.subr.mxu0 0.0
    %745 = vmatpush2.msra.mxu0 0.0
    %746 = vmatprep.subr.mxu0 0.0
    %747 = vmatpush2.msra.mxu0 0.0
    %748 = vmatprep.subr.mxu0 0.0
    %749 = vmatpush2.msra.mxu0 0.0
    %750 = vmatprep.subr.mxu0 0.0
    %751 = vmatpush2.msra.mxu0 0.0
    %752 = vmatprep.subr.mxu0 0.0
    %753 = vmatpush2.msra.mxu0 0.0
    %754 = vmatprep.subr.mxu0 0.0
    %755 = vmatpush2.msra.mxu0 0.0
    %756 = vmatprep.subr.mxu0 0.0
    %757 = vmatpush2.msra.mxu0 0.0
    %758 = vmatprep.subr.mxu0 0.0
    %759 = vmatpush2.msra.mxu0 0.0
    %760 = vmatprep.subr.mxu0 0.0
    %761 = vmatpush2.msra.mxu0 0.0
    %762 = vmatprep.subr.mxu0 0.0
    %763 = vmatpush2.msra.mxu0 0.0
    %764 = vmatprep.subr.mxu0 0.0
    %765 = vmatpush2.msra.mxu0 0.0
    %766 = vmatprep.subr.mxu0 0.0
    %767 = vmatpush2.msra.mxu0 0.0
    %768 = vmatprep.subr.mxu0 0.0
    %769 = vmatpush2.msra.mxu0 0.0
    %770 = vmatprep.subr.mxu0 0.0
    %771 = vmatpush2.msra.mxu0 0.0
    %772 = vmatprep.subr.mxu0 0.0
    %773 = vmatpush2.msra.mxu0 0.0
    %774 = vmatprep.mubr.f32.mxu0 0.0
    %775 = vmatmul.mubr.f32.gmra.mxu0 %v705
    %v776 = vpop.f32.mrf.mxu0
    %v777 = vadd.f32 %v702, %v776
    %v778 = vpop.f32.mrf.mxu0
    %779 = vdwg.mxu0
    %vm780 = vcmask 48128
    %781 = vst.msk [vmem:[#allocation2] sm:$0xff] %vm780, %v777
    // Predicated region
    $region22: #{torch_model_forward.1} parent=1 // pred_check
      _
    $region23: #{torch_model_forward.1} parent=1 // pred_check_branch
      %783 = sbr.rel (0) target = $region25
    $region24: #{torch_model_forward.1} parent=1 // pred_region
      %s785 = ssub.s32 128, 128
      %786 = vsyncadd [#allocation3], %s785
      %s788 = sshll.u32 [#allocation2], 4
      %s789 = int_to_ptr.vmem [resolvable:$true] %s788
      %791 = dma.vmem_to_hbm [thread:$0]  %s789, 128, %s5, [#allocation3]
    $region25: #{torch_model_forward.1} parent=1 // pred_fallthru
      _
    // Predicated region
    $region26: #{torch_model_forward.1} parent=1 // pred_check
      _
    $region27: #{torch_model_forward.1} parent=1 // pred_check_branch
      %793 = sbr.rel (0) target = $region29
    $region28: #{torch_model_forward.1} parent=1 // pred_region
      %794 = dma.done [#allocation3], 128
    $region29: #{torch_model_forward.1} parent=1 // pred_fallthru
      _
    %795 = vsyncpa [#allocation3], 1

</llo_original>
